<compile_context>
chip_gen: v7x
topology: tpu7x:2x2x1
jax: 0.10.0
libtpu: 0.0.40
codegen_flags: <defaults>
</compile_context>

<pallas_src>
import jax
import jax.numpy as jnp
from jax.experimental import pallas as pl
from jax.experimental.pallas import tpu as pltpu

LANES = 128  # lane-padded weight width (vreg lane count)


def hidden2normal_kernel(x_ref, wt_ref, b_ref, o_ref):
    # x_ref: (TILE_N, H)  wt_ref: (H, 128)  b_ref: (1, 128)  o_ref: (TILE_N, 3)
    y = jnp.dot(x_ref[...], wt_ref[...], preferred_element_type=jnp.float32)
    y = y + b_ref[...]
    # normal[:, 2] = sigmoid(normal[:, 2]) -> select lane 2 (constant-folded iota).
    col = jax.lax.broadcasted_iota(jnp.int32, y.shape, 1)
    y = jnp.where(col == 2, jax.nn.sigmoid(y), y)
    # Store only the 3 real columns -> narrow HBM writeback.
    o_ref[...] = y[:, :3].astype(o_ref.dtype)


def _round_up(x, m):
    return (x + m - 1) // m * m


def _call(x, wt_pad, b_pad, tile_n, *, single_buffer_weights):
    n, h = x.shape
    grid = (pl.cdiv(n, tile_n),)
    wb_kwargs = {}
    if single_buffer_weights:
        # Constant index_map -> double-buffering the resident weight/bias buys nothing.
        wb_kwargs = dict(pipeline_mode=pl.Buffered(1))
    return pl.pallas_call(
        hidden2normal_kernel,
        out_shape=jax.ShapeDtypeStruct((n, 3), x.dtype),
        grid=grid,
        in_specs=[
            pl.BlockSpec((tile_n, h), lambda i: (i, 0)),              # streamed x tiles
            pl.BlockSpec((h, LANES), lambda i: (0, 0), **wb_kwargs),  # resident weight
            pl.BlockSpec((1, LANES), lambda i: (0, 0), **wb_kwargs),  # resident bias row
        ],
        out_specs=pl.BlockSpec((tile_n, 3), lambda i: (i, 0)),        # narrow output
        compiler_params=pltpu.CompilerParams(
            # Shard row tiles across TensorCores on v7x; no-op on v5e/v6e.
            dimension_semantics=("parallel",),
            # Explicit budget: raises v5e's 16 MiB default, stays well within
            # v7x's 64 MiB physical VMEM.
            vmem_limit_bytes=32 << 20,
        ),
    )(x, wt_pad, b_pad)


def hidden2normal(hidden_state, weight, bias, *, tile_n=None):
    """hidden_state: (N, H); weight: (3, H) torch Linear layout; bias: (3,)."""
    n, h = hidden_state.shape
    dtype = hidden_state.dtype
    itemsize = jnp.dtype(dtype).itemsize

    if tile_n is None:
        # Per-row VMEM: double-buffered x rows (2*H*itemsize) plus double-buffered
        # output rows (lane-padded to 128 in VMEM even though only 3 lanes hit HBM).
        # Keep the streamed buffers within ~16 MiB, leaving headroom for the
        # resident weight under the 32 MiB scoped-VMEM limit set above.
        per_row = 2 * h * itemsize + 2 * LANES * 4
        tile_n = max(8, min(8192, ((16 << 20) // per_row) // 8 * 8))
        # v7x megacore: ensure >= 2 row tiles when N allows, so both TCs get work.
        tile_n = min(tile_n, max(8, _round_up(pl.cdiv(n, 2), 8)))

    # Lane-padded weight / bias: (H, 128) and (1, 128), zero beyond column 2.
    wt_pad = jnp.zeros((h, LANES), dtype).at[:, :3].set(weight.T.astype(dtype))
    b_pad = jnp.zeros((1, LANES), dtype).at[0, :3].set(bias.astype(dtype))

    try:
        return _call(hidden_state, wt_pad, b_pad, tile_n, single_buffer_weights=True)
    except Exception:
        # pipeline_mode=pl.Buffered(1) not supported by this jax build; the only cost
        # of the fallback is one extra resident copy of the (H, 128) weight in VMEM.
        return _call(hidden_state, wt_pad, b_pad, tile_n, single_buffer_weights=False)


def _reference(hidden_state, weight, bias):
    y = hidden_state @ weight.T + bias
    return y.at[:, 2].set(jax.nn.sigmoid(y[:, 2]))


if __name__ == "__main__":
    hidden_dim = 32
    key = jax.random.PRNGKey(0)
    k_x, k_w, k_b = jax.random.split(key, 3)

    # Deterministic "torch-like" init: U(-1/sqrt(H), 1/sqrt(H)) for weight & bias.
    bound = 1.0 / (hidden_dim ** 0.5)
    weight = jax.random.uniform(k_w, (3, hidden_dim), jnp.float32, -bound, bound)
    bias = jax.random.uniform(k_b, (3,), jnp.float32, -bound, bound)

    ok = True
    for batch in (8, 20):  # 20 exercises the ragged final block (tile_n=16, grid=2)
        hidden_state = jax.random.normal(
            jax.random.fold_in(k_x, batch), (batch, hidden_dim), jnp.float32
        )
        out = jax.block_until_ready(hidden2normal(hidden_state, weight, bias))
        ref = _reference(hidden_state, weight, bias)
        ok = ok and out.shape == (batch, 3)
        ok = ok and bool(jnp.allclose(out, ref, atol=1e-5, rtol=1e-5))

    assert ok
    print("KERNEL_OK")
</pallas_src>

<mosaic_0001>
module attributes {stable_mosaic.version = 11 : i64} {
  func.func @hidden2normal_kernel(%arg0: i32, %arg1: memref<8x32xf32, #tpu.memory_space<vmem>>, %arg2: memref<32x128xf32, #tpu.memory_space<vmem>>, %arg3: memref<1x128xf32, #tpu.memory_space<vmem>>, %arg4: memref<8x3xf32, #tpu.memory_space<vmem>>) attributes {dimension_semantics = [#tpu.dimension_semantics<parallel>], iteration_bounds = array<i64: 1>, scalar_prefetch = 0 : i64, scratch_operands = 0 : i64, tpu.core_type = #tpu.core_type<tc>, window_params = [{transform_indices = @transform_0, window_bounds = array<i64: 8, 32>}, {pipeline_mode = #tpu.pipeline_mode<synchronous>, transform_indices = @transform_1, window_bounds = array<i64: 32, 128>}, {pipeline_mode = #tpu.pipeline_mode<synchronous>, transform_indices = @transform_2, window_bounds = array<i64: 1, 128>}, {transform_indices = @transform_3, window_bounds = array<i64: 8, 3>}]} {
    %c0 = arith.constant 0 : index
    %c0_0 = arith.constant 0 : index
    %0 = vector.load %arg1[%c0, %c0_0] : memref<8x32xf32, #tpu.memory_space<vmem>>, vector<8x32xf32>
    %c0_1 = arith.constant 0 : index
    %c0_2 = arith.constant 0 : index
    %1 = vector.load %arg2[%c0_1, %c0_2] : memref<32x128xf32, #tpu.memory_space<vmem>>, vector<32x128xf32>
    %cst = arith.constant dense<0.000000e+00> : vector<8x128xf32>
    %2 = tpu.matmul %0, %1, %cst {dimension_numbers = #tpu.dot_dimension_numbers<[1], [0], [0], [1], [0, 0, 1, 1], [], []>} : vector<8x32xf32>, vector<32x128xf32>, vector<8x128xf32> -> vector<8x128xf32>
    %c0_3 = arith.constant 0 : index
    %c0_4 = arith.constant 0 : index
    %3 = vector.load %arg3[%c0_3, %c0_4] : memref<1x128xf32, #tpu.memory_space<vmem>>, vector<1x128xf32>
    %4 = vector.broadcast %3 : vector<1x128xf32> to vector<8x128xf32>
    %5 = arith.addf %2, %4 : vector<8x128xf32>
    %6 = tpu.iota {dimensions = array<i32: 1>} : vector<8x128xi32>
    %c2_i32 = arith.constant 2 : i32
    %7 = vector.broadcast %c2_i32 : i32 to vector<8x128xi32>
    %8 = arith.cmpi eq, %6, %7 : vector<8x128xi32>
    %9 = arith.negf %5 : vector<8x128xf32>
    %10 = math.exp %9 : vector<8x128xf32>
    %cst_5 = arith.constant 1.000000e+00 : f32
    %11 = vector.broadcast %cst_5 : f32 to vector<8x128xf32>
    %12 = arith.addf %11, %10 : vector<8x128xf32>
    %13 = arith.divf %11, %12 : vector<8x128xf32>
    %14 = arith.select %8, %13, %5 : vector<8x128xi1>, vector<8x128xf32>
    %15 = vector.extract_strided_slice %14 {offsets = [0, 0], sizes = [8, 3], strides = [1, 1]} : vector<8x128xf32> to vector<8x3xf32>
    %c0_6 = arith.constant 0 : index
    %c0_7 = arith.constant 0 : index
    %16 = vector.load %arg4[%c0_6, %c0_7] : memref<8x3xf32, #tpu.memory_space<vmem>>, vector<8x3xf32>
    tpu.vector_store %arg4[%c0_6, %c0_7], %15 {strides = array<i32>} : memref<8x3xf32, #tpu.memory_space<vmem>>, vector<8x3xf32>,
    return
  }
  func.func @transform_0(%arg0: i32) -> (i32, i32) {
    %c0_i32 = arith.constant 0 : i32
    %c0_i32_0 = arith.constant 0 : i32
    return %arg0, %c0_i32 : i32, i32
  }
  func.func @transform_1(%arg0: i32) -> (i32, i32) {
    %c0_i32 = arith.constant 0 : i32
    %c0_i32_0 = arith.constant 0 : i32
    %c0_i32_1 = arith.constant 0 : i32
    return %c0_i32, %c0_i32_0 : i32, i32
  }
  func.func @transform_2(%arg0: i32) -> (i32, i32) {
    %c0_i32 = arith.constant 0 : i32
    %c0_i32_0 = arith.constant 0 : i32
    %c0_i32_1 = arith.constant 0 : i32
    return %c0_i32, %c0_i32_0 : i32, i32
  }
  func.func @transform_3(%arg0: i32) -> (i32, i32) {
    %c0_i32 = arith.constant 0 : i32
    %c0_i32_0 = arith.constant 0 : i32
    return %arg0, %c0_i32 : i32, i32
  }
}

module attributes {stable_mosaic.version = 11 : i64} {
  func.func @hidden2normal_kernel(%arg0: i32, %arg1: memref<8x32xf32, #tpu.memory_space<vmem>>, %arg2: memref<32x128xf32, #tpu.memory_space<vmem>>, %arg3: memref<1x128xf32, #tpu.memory_space<vmem>>, %arg4: memref<8x3xf32, #tpu.memory_space<vmem>>) attributes {dimension_semantics = [#tpu.dimension_semantics<parallel>], iteration_bounds = array<i64: 1>, scalar_prefetch = 0 : i64, scratch_operands = 0 : i64, tpu.core_type = #tpu.core_type<tc>, window_params = [{transform_indices = @transform_0, window_bounds = array<i64: 8, 32>}, {pipeline_mode = #tpu.pipeline_mode<synchronous>, transform_indices = @transform_1, window_bounds = array<i64: 32, 128>}, {pipeline_mode = #tpu.pipeline_mode<synchronous>, transform_indices = @transform_2, window_bounds = array<i64: 1, 128>}, {transform_indices = @transform_3, window_bounds = array<i64: 8, 3>}]} {
    %c0 = arith.constant 0 : index
    %c0_0 = arith.constant 0 : index
    %0 = vector.load %arg1[%c0, %c0_0] : memref<8x32xf32, #tpu.memory_space<vmem>>, vector<8x32xf32>
    %c0_1 = arith.constant 0 : index
    %c0_2 = arith.constant 0 : index
    %1 = vector.load %arg2[%c0_1, %c0_2] : memref<32x128xf32, #tpu.memory_space<vmem>>, vector<32x128xf32>
    %cst = arith.constant dense<0.000000e+00> : vector<8x128xf32>
    %2 = tpu.matmul %0, %1, %cst {dimension_numbers = #tpu.dot_dimension_numbers<[1], [0], [0], [1], [0, 0, 1, 1], [], []>} : vector<8x32xf32>, vector<32x128xf32>, vector<8x128xf32> -> vector<8x128xf32>
    %c0_3 = arith.constant 0 : index
    %c0_4 = arith.constant 0 : index
    %3 = vector.load %arg3[%c0_3, %c0_4] : memref<1x128xf32, #tpu.memory_space<vmem>>, vector<1x128xf32>
    %4 = vector.broadcast %3 : vector<1x128xf32> to vector<8x128xf32>
    %5 = arith.addf %2, %4 : vector<8x128xf32>
    %6 = tpu.iota {dimensions = array<i32: 1>} : vector<8x128xi32>
    %c2_i32 = arith.constant 2 : i32
    %7 = vector.broadcast %c2_i32 : i32 to vector<8x128xi32>
    %8 = arith.cmpi eq, %6, %7 : vector<8x128xi32>
    %9 = arith.negf %5 : vector<8x128xf32>
    %10 = math.exp %9 : vector<8x128xf32>
    %cst_5 = arith.constant 1.000000e+00 : f32
    %11 = vector.broadcast %cst_5 : f32 to vector<8x128xf32>
    %12 = arith.addf %11, %10 : vector<8x128xf32>
    %13 = arith.divf %11, %12 : vector<8x128xf32>
    %14 = arith.select %8, %13, %5 : vector<8x128xi1>, vector<8x128xf32>
    %15 = vector.extract_strided_slice %14 {offsets = [0, 0], sizes = [8, 3], strides = [1, 1]} : vector<8x128xf32> to vector<8x3xf32>
    %c0_6 = arith.constant 0 : index
    %c0_7 = arith.constant 0 : index
    %16 = vector.load %arg4[%c0_6, %c0_7] : memref<8x3xf32, #tpu.memory_space<vmem>>, vector<8x3xf32>
    tpu.vector_store %arg4[%c0_6, %c0_7], %15 {strides = array<i32>} : memref<8x3xf32, #tpu.memory_space<vmem>>, vector<8x3xf32>,
    return
  }
  func.func @transform_0(%arg0: i32) -> (i32, i32) {
    %c0_i32 = arith.constant 0 : i32
    %c0_i32_0 = arith.constant 0 : i32
    return %arg0, %c0_i32 : i32, i32
  }
  func.func @transform_1(%arg0: i32) -> (i32, i32) {
    %c0_i32 = arith.constant 0 : i32
    %c0_i32_0 = arith.constant 0 : i32
    %c0_i32_1 = arith.constant 0 : i32
    return %c0_i32, %c0_i32_0 : i32, i32
  }
  func.func @transform_2(%arg0: i32) -> (i32, i32) {
    %c0_i32 = arith.constant 0 : i32
    %c0_i32_0 = arith.constant 0 : i32
    %c0_i32_1 = arith.constant 0 : i32
    return %c0_i32, %c0_i32_0 : i32, i32
  }
  func.func @transform_3(%arg0: i32) -> (i32, i32) {
    %c0_i32 = arith.constant 0 : i32
    %c0_i32_0 = arith.constant 0 : i32
    return %arg0, %c0_i32 : i32, i32
  }
}

</mosaic_0001>

<llo_original>
// kernel: tpu_custom_call.1
$region0: #{tpu_custom_call.1}
  #allocation0 [shape = 'u32[]', space=smem, size = 0x4, offset = 0x4, fixed_abs, tag = 'smem constant byte address 0x4 - core index']
  #allocation1 [shape = 'u32[144,128]{1,0:T(1,128)}', space=vmem, size = 0x12000, scoped, tag = 'internal scratch']
  %s0 = inlined_call_operand.hbm [shape: f32[8,32], index: 0, kind: input, shape index: {}]
  %s1 = inlined_call_operand.hbm [shape: f32[32,128], index: 1, kind: input, shape index: {}]
  %s2 = inlined_call_operand.vmem [shape: f32[1,128], index: 2, kind: input, shape index: {}]
  %s3 = inlined_call_operand.vmem [shape: f32[8,3], index: 3, kind: output, shape index: {}]
  %s4 = sld [smem:[#allocation0]]
  $region30: #{tpu_custom_call.1} parent=0
    _
  %s6 = ssub.s32 1, %s4
  %s7 = scalar_select 0, %s6, %s4
  $region1: #{tpu_custom_call.1} parent=0
    #allocation2 [shape = 'u8[4096]{0}', space=vmem, size = 0x1000, scoped, tag = 'input window, operand 0, single buffered']
    #allocation3 [shape = 's32[1]{0}', space=sflag, size = 0x4, scoped, tag = 'scoped memory for tpu_custom_call.1']
    #allocation4 [shape = 'u8[16384]{0}', space=vmem, size = 0x4000, scoped, tag = 'input window, operand 1, single buffered']
    #allocation5 [shape = 's32[1]{0}', space=sflag, size = 0x4, scoped, tag = 'scoped memory for tpu_custom_call.1']
    %8 = vsyncpa [#allocation3], 0
    %9 = vsyncpa [#allocation5], 0
    // Predicated region
    $region2: #{tpu_custom_call.1} parent=1 // pred_check
      _
    $region3: #{tpu_custom_call.1} parent=1 // pred_check_branch
      %11 = sbr.rel (0) target = $region5
    $region4: #{tpu_custom_call.1} parent=1 // pred_region
      %s13 = ssub.s32 128, 128
      %14 = vsyncadd [#allocation3], %s13
      %s16 = sshll.u32 [#allocation2], 4
      %s17 = int_to_ptr.vmem [resolvable:$true] %s16
      %19 = dma.hbm_to_vmem [thread:$0]  %s0, 128, %s17, [#allocation3]
    $region5: #{tpu_custom_call.1} parent=1 // pred_fallthru
      _
    // Predicated region
    $region6: #{tpu_custom_call.1} parent=1 // pred_check
      _
    $region7: #{tpu_custom_call.1} parent=1 // pred_check_branch
      %21 = sbr.rel (0) target = $region9
    $region8: #{tpu_custom_call.1} parent=1 // pred_region
      %s23 = ssub.s32 512, 512
      %24 = vsyncadd [#allocation5], %s23
      %s25 = sshll.u32 [#allocation4], 4
      %s26 = int_to_ptr.vmem [resolvable:$true] %s25
      %31 = dma.hbm_to_vmem [thread:$0]  %s1, 512, %s26, [#allocation5], 128, 128, 8
    $region9: #{tpu_custom_call.1} parent=1 // pred_fallthru
      _
    // Predicated region
    $region10: #{tpu_custom_call.1} parent=1 // pred_check
      _
    $region11: #{tpu_custom_call.1} parent=1 // pred_check_branch
      %33 = sbr.rel (0) target = $region13
    $region12: #{tpu_custom_call.1} parent=1 // pred_region
      _
    $region13: #{tpu_custom_call.1} parent=1 // pred_fallthru
      _
    // Predicated region
    $region14: #{tpu_custom_call.1} parent=1 // pred_check
      _
    $region15: #{tpu_custom_call.1} parent=1 // pred_check_branch
      %35 = sbr.rel (0) target = $region17
    $region16: #{tpu_custom_call.1} parent=1 // pred_region
      %36 = dma.done [#allocation3], 128
    $region17: #{tpu_custom_call.1} parent=1 // pred_fallthru
      _
    // Predicated region
    $region18: #{tpu_custom_call.1} parent=1 // pred_check
      _
    $region19: #{tpu_custom_call.1} parent=1 // pred_check_branch
      %38 = sbr.rel (0) target = $region21
    $region20: #{tpu_custom_call.1} parent=1 // pred_region
      %39 = dma.done [#allocation5], 512
    $region21: #{tpu_custom_call.1} parent=1 // pred_fallthru
      _
    %v40 = vld [vmem:[#allocation2] sm:$0xff]
    %v41 = vld [vmem:[#allocation4] sm:$0xff]
    %v42 = vld [vmem:[#allocation4 + $0x8] sm:$0xff]
    %v43 = vld [vmem:[#allocation4 + $0x10] sm:$0xff]
    %v44 = vld [vmem:[#allocation4 + $0x18] sm:$0xff]
    %v45 = vld [vmem:[%s2] sm:$0x1]
    %v47 = vlaneseq
    %v48 = vshrl.u32 %v47, 7
    %v49 = vsub.s32 0, %v48
    %v50 = vrot.slane %v45, %v49
    %vm52 = vcmask 261120
    %v54 = vsel %vm52, %v40, 0
    %56 = vmatprep.subr.mxu0 0.0
    %57 = vmatpush1.msra.mxu0 %v41
    %58 = vmatprep.subr.mxu0 0.0
    %59 = vmatpush1.msra.mxu0 %v42
    %60 = vmatprep.subr.mxu0 0.0
    %61 = vmatpush1.msra.mxu0 %v43
    %62 = vmatprep.subr.mxu0 0.0
    %63 = vmatpush1.msra.mxu0 %v44
    %64 = vmatprep.subr.mxu0 0.0
    %65 = vmatpush1.msra.mxu0 0.0
    %66 = vmatprep.subr.mxu0 0.0
    %67 = vmatpush1.msra.mxu0 0.0
    %68 = vmatprep.subr.mxu0 0.0
    %69 = vmatpush1.msra.mxu0 0.0
    %70 = vmatprep.subr.mxu0 0.0
    %71 = vmatpush1.msra.mxu0 0.0
    %72 = vmatprep.subr.mxu0 0.0
    %73 = vmatpush1.msra.mxu0 0.0
    %74 = vmatprep.subr.mxu0 0.0
    %75 = vmatpush1.msra.mxu0 0.0
    %76 = vmatprep.subr.mxu0 0.0
    %77 = vmatpush1.msra.mxu0 0.0
    %78 = vmatprep.subr.mxu0 0.0
    %79 = vmatpush1.msra.mxu0 0.0
    %80 = vmatprep.subr.mxu0 0.0
    %81 = vmatpush1.msra.mxu0 0.0
    %82 = vmatprep.subr.mxu0 0.0
    %83 = vmatpush1.msra.mxu0 0.0
    %84 = vmatprep.subr.mxu0 0.0
    %85 = vmatpush1.msra.mxu0 0.0
    %86 = vmatprep.subr.mxu0 0.0
    %87 = vmatpush1.msra.mxu0 0.0
    %88 = vmatprep.subr.mxu0 0.0
    %89 = vmatpush1.msra.mxu0 0.0
    %90 = vmatprep.subr.mxu0 0.0
    %91 = vmatpush1.msra.mxu0 0.0
    %92 = vmatprep.subr.mxu0 0.0
    %93 = vmatpush1.msra.mxu0 0.0
    %94 = vmatprep.subr.mxu0 0.0
    %95 = vmatpush1.msra.mxu0 0.0
    %96 = vmatprep.subr.mxu0 0.0
    %97 = vmatpush1.msra.mxu0 0.0
    %98 = vmatprep.subr.mxu0 0.0
    %99 = vmatpush1.msra.mxu0 0.0
    %100 = vmatprep.subr.mxu0 0.0
    %101 = vmatpush1.msra.mxu0 0.0
    %102 = vmatprep.subr.mxu0 0.0
    %103 = vmatpush1.msra.mxu0 0.0
    %104 = vmatprep.subr.mxu0 0.0
    %105 = vmatpush1.msra.mxu0 0.0
    %106 = vmatprep.subr.mxu0 0.0
    %107 = vmatpush1.msra.mxu0 0.0
    %108 = vmatprep.subr.mxu0 0.0
    %109 = vmatpush1.msra.mxu0 0.0
    %110 = vmatprep.subr.mxu0 0.0
    %111 = vmatpush1.msra.mxu0 0.0
    %112 = vmatprep.subr.mxu0 0.0
    %113 = vmatpush1.msra.mxu0 0.0
    %114 = vmatprep.subr.mxu0 0.0
    %115 = vmatpush1.msra.mxu0 0.0
    %116 = vmatprep.subr.mxu0 0.0
    %117 = vmatpush1.msra.mxu0 0.0
    %118 = vmatprep.subr.mxu0 0.0
    %119 = vmatpush1.msra.mxu0 0.0
    %120 = vmatprep.mubr.f32.mxu0 0.0
    %121 = vmatmul.mubr.f32.gmra.mrb[0].mxu0 %v54
    %v122 = vpop.f32.mrb[0].mxu0
    %v123 = vadd.f32 %v50, %v122
    %v124 = vpop.f32.mrb[0].mxu0
    %125 = vdwg.mxu0
    %v126 = vlaneseq
    %v127 = vand.u32 %v126, 127
    %vm128 = vcmp.eq.s32.totalorder %v127, 2
    %v129 = vxor.u32 %v123, 2147483648
    %v130 = vmul.f32 %v129, 1.442695
    %v131 = vpow.pop %v130
    %v132 = vadd.f32 %v131, 1.0
    %v133 = vrcp.pop %v132
    %v134 = vmul.f32 1.0, %v133
    %v135 = vsel %vm128, %v134, %v123
    %vm136 = vcmask 23552
    %137 = vst.msk [vmem:[%s3] sm:$0xff] %vm136, %v135
    // Predicated region
    $region22: #{tpu_custom_call.1} parent=1 // pred_check
      _
    $region23: #{tpu_custom_call.1} parent=1 // pred_check_branch
      %139 = sbr.rel (0) target = $region25
    $region24: #{tpu_custom_call.1} parent=1 // pred_region
      _
    $region25: #{tpu_custom_call.1} parent=1 // pred_fallthru
      _
    // Predicated region
    $region26: #{tpu_custom_call.1} parent=1 // pred_check
      _
    $region27: #{tpu_custom_call.1} parent=1 // pred_check_branch
      %141 = sbr.rel (0) target = $region29
    $region28: #{tpu_custom_call.1} parent=1 // pred_region
      _
    $region29: #{tpu_custom_call.1} parent=1 // pred_fallthru
      _
    %142 = vsyncpa [#allocation3], 1
    %143 = vsyncpa [#allocation5], 1

// kernel: tpu_custom_call.1
$region0: #{tpu_custom_call.1}
  #allocation0 [shape = 'u32[]', space=smem, size = 0x4, offset = 0x4, fixed_abs, tag = 'smem constant byte address 0x4 - core index']
  #allocation1 [shape = 'u32[144,128]{1,0:T(1,128)}', space=vmem, size = 0x12000, scoped, tag = 'internal scratch']
  %s0 = inlined_call_operand.hbm [shape: f32[8,32], index: 0, kind: input, shape index: {}]
  %s1 = inlined_call_operand.hbm [shape: f32[32,128], index: 1, kind: input, shape index: {}]
  %s2 = inlined_call_operand.vmem [shape: f32[1,128], index: 2, kind: input, shape index: {}]
  %s3 = inlined_call_operand.vmem [shape: f32[8,3], index: 3, kind: output, shape index: {}]
  %s4 = sld [smem:[#allocation0]]
  $region30: #{tpu_custom_call.1} parent=0
    _
  %s6 = ssub.s32 1, %s4
  %s7 = scalar_select 0, %s6, %s4
  $region1: #{tpu_custom_call.1} parent=0
    #allocation2 [shape = 'u8[4096]{0}', space=vmem, size = 0x1000, scoped, tag = 'input window, operand 0, single buffered']
    #allocation3 [shape = 's32[1]{0}', space=sflag, size = 0x4, scoped, tag = 'scoped memory for tpu_custom_call.1']
    #allocation4 [shape = 'u8[16384]{0}', space=vmem, size = 0x4000, scoped, tag = 'input window, operand 1, single buffered']
    #allocation5 [shape = 's32[1]{0}', space=sflag, size = 0x4, scoped, tag = 'scoped memory for tpu_custom_call.1']
    %8 = vsyncpa [#allocation3], 0
    %9 = vsyncpa [#allocation5], 0
    // Predicated region
    $region2: #{tpu_custom_call.1} parent=1 // pred_check
      _
    $region3: #{tpu_custom_call.1} parent=1 // pred_check_branch
      %11 = sbr.rel (0) target = $region5
    $region4: #{tpu_custom_call.1} parent=1 // pred_region
      %s13 = ssub.s32 128, 128
      %14 = vsyncadd [#allocation3], %s13
      %s16 = sshll.u32 [#allocation2], 4
      %s17 = int_to_ptr.vmem [resolvable:$true] %s16
      %19 = dma.hbm_to_vmem [thread:$0]  %s0, 128, %s17, [#allocation3]
    $region5: #{tpu_custom_call.1} parent=1 // pred_fallthru
      _
    // Predicated region
    $region6: #{tpu_custom_call.1} parent=1 // pred_check
      _
    $region7: #{tpu_custom_call.1} parent=1 // pred_check_branch
      %21 = sbr.rel (0) target = $region9
    $region8: #{tpu_custom_call.1} parent=1 // pred_region
      %s23 = ssub.s32 512, 512
      %24 = vsyncadd [#allocation5], %s23
      %s25 = sshll.u32 [#allocation4], 4
      %s26 = int_to_ptr.vmem [resolvable:$true] %s25
      %31 = dma.hbm_to_vmem [thread:$0]  %s1, 512, %s26, [#allocation5], 128, 128, 8
    $region9: #{tpu_custom_call.1} parent=1 // pred_fallthru
      _
    // Predicated region
    $region10: #{tpu_custom_call.1} parent=1 // pred_check
      _
    $region11: #{tpu_custom_call.1} parent=1 // pred_check_branch
      %33 = sbr.rel (0) target = $region13
    $region12: #{tpu_custom_call.1} parent=1 // pred_region
      _
    $region13: #{tpu_custom_call.1} parent=1 // pred_fallthru
      _
    // Predicated region
    $region14: #{tpu_custom_call.1} parent=1 // pred_check
      _
    $region15: #{tpu_custom_call.1} parent=1 // pred_check_branch
      %35 = sbr.rel (0) target = $region17
    $region16: #{tpu_custom_call.1} parent=1 // pred_region
      %36 = dma.done [#allocation3], 128
    $region17: #{tpu_custom_call.1} parent=1 // pred_fallthru
      _
    // Predicated region
    $region18: #{tpu_custom_call.1} parent=1 // pred_check
      _
    $region19: #{tpu_custom_call.1} parent=1 // pred_check_branch
      %38 = sbr.rel (0) target = $region21
    $region20: #{tpu_custom_call.1} parent=1 // pred_region
      %39 = dma.done [#allocation5], 512
    $region21: #{tpu_custom_call.1} parent=1 // pred_fallthru
      _
    %v40 = vld [vmem:[#allocation2] sm:$0xff]
    %v41 = vld [vmem:[#allocation4] sm:$0xff]
    %v42 = vld [vmem:[#allocation4 + $0x8] sm:$0xff]
    %v43 = vld [vmem:[#allocation4 + $0x10] sm:$0xff]
    %v44 = vld [vmem:[#allocation4 + $0x18] sm:$0xff]
    %v45 = vld [vmem:[%s2] sm:$0x1]
    %v47 = vlaneseq
    %v48 = vshrl.u32 %v47, 7
    %v49 = vsub.s32 0, %v48
    %v50 = vrot.slane %v45, %v49
    %vm52 = vcmask 261120
    %v54 = vsel %vm52, %v40, 0
    %56 = vmatprep.subr.mxu0 0.0
    %57 = vmatpush1.msra.mxu0 %v41
    %58 = vmatprep.subr.mxu0 0.0
    %59 = vmatpush1.msra.mxu0 %v42
    %60 = vmatprep.subr.mxu0 0.0
    %61 = vmatpush1.msra.mxu0 %v43
    %62 = vmatprep.subr.mxu0 0.0
    %63 = vmatpush1.msra.mxu0 %v44
    %64 = vmatprep.subr.mxu0 0.0
    %65 = vmatpush1.msra.mxu0 0.0
    %66 = vmatprep.subr.mxu0 0.0
    %67 = vmatpush1.msra.mxu0 0.0
    %68 = vmatprep.subr.mxu0 0.0
    %69 = vmatpush1.msra.mxu0 0.0
    %70 = vmatprep.subr.mxu0 0.0
    %71 = vmatpush1.msra.mxu0 0.0
    %72 = vmatprep.subr.mxu0 0.0
    %73 = vmatpush1.msra.mxu0 0.0
    %74 = vmatprep.subr.mxu0 0.0
    %75 = vmatpush1.msra.mxu0 0.0
    %76 = vmatprep.subr.mxu0 0.0
    %77 = vmatpush1.msra.mxu0 0.0
    %78 = vmatprep.subr.mxu0 0.0
    %79 = vmatpush1.msra.mxu0 0.0
    %80 = vmatprep.subr.mxu0 0.0
    %81 = vmatpush1.msra.mxu0 0.0
    %82 = vmatprep.subr.mxu0 0.0
    %83 = vmatpush1.msra.mxu0 0.0
    %84 = vmatprep.subr.mxu0 0.0
    %85 = vmatpush1.msra.mxu0 0.0
    %86 = vmatprep.subr.mxu0 0.0
    %87 = vmatpush1.msra.mxu0 0.0
    %88 = vmatprep.subr.mxu0 0.0
    %89 = vmatpush1.msra.mxu0 0.0
    %90 = vmatprep.subr.mxu0 0.0
    %91 = vmatpush1.msra.mxu0 0.0
    %92 = vmatprep.subr.mxu0 0.0
    %93 = vmatpush1.msra.mxu0 0.0
    %94 = vmatprep.subr.mxu0 0.0
    %95 = vmatpush1.msra.mxu0 0.0
    %96 = vmatprep.subr.mxu0 0.0
    %97 = vmatpush1.msra.mxu0 0.0
    %98 = vmatprep.subr.mxu0 0.0
    %99 = vmatpush1.msra.mxu0 0.0
    %100 = vmatprep.subr.mxu0 0.0
    %101 = vmatpush1.msra.mxu0 0.0
    %102 = vmatprep.subr.mxu0 0.0
    %103 = vmatpush1.msra.mxu0 0.0
    %104 = vmatprep.subr.mxu0 0.0
    %105 = vmatpush1.msra.mxu0 0.0
    %106 = vmatprep.subr.mxu0 0.0
    %107 = vmatpush1.msra.mxu0 0.0
    %108 = vmatprep.subr.mxu0 0.0
    %109 = vmatpush1.msra.mxu0 0.0
    %110 = vmatprep.subr.mxu0 0.0
    %111 = vmatpush1.msra.mxu0 0.0
    %112 = vmatprep.subr.mxu0 0.0
    %113 = vmatpush1.msra.mxu0 0.0
    %114 = vmatprep.subr.mxu0 0.0
    %115 = vmatpush1.msra.mxu0 0.0
    %116 = vmatprep.subr.mxu0 0.0
    %117 = vmatpush1.msra.mxu0 0.0
    %118 = vmatprep.subr.mxu0 0.0
    %119 = vmatpush1.msra.mxu0 0.0
    %120 = vmatprep.mubr.f32.mxu0 0.0
    %121 = vmatmul.mubr.f32.gmra.mrb[0].mxu0 %v54
    %v122 = vpop.f32.mrb[0].mxu0
    %v123 = vadd.f32 %v50, %v122
    %v124 = vpop.f32.mrb[0].mxu0
    %125 = vdwg.mxu0
    %v126 = vlaneseq
    %v127 = vand.u32 %v126, 127
    %vm128 = vcmp.eq.s32.totalorder %v127, 2
    %v129 = vxor.u32 %v123, 2147483648
    %v130 = vmul.f32 %v129, 1.442695
    %v131 = vpow.pop %v130
    %v132 = vadd.f32 %v131, 1.0
    %v133 = vrcp.pop %v132
    %v134 = vmul.f32 1.0, %v133
    %v135 = vsel %vm128, %v134, %v123
    %vm136 = vcmask 23552
    %137 = vst.msk [vmem:[%s3] sm:$0xff] %vm136, %v135
    // Predicated region
    $region22: #{tpu_custom_call.1} parent=1 // pred_check
      _
    $region23: #{tpu_custom_call.1} parent=1 // pred_check_branch
      %139 = sbr.rel (0) target = $region25
    $region24: #{tpu_custom_call.1} parent=1 // pred_region
      _
    $region25: #{tpu_custom_call.1} parent=1 // pred_fallthru
      _
    // Predicated region
    $region26: #{tpu_custom_call.1} parent=1 // pred_check
      _
    $region27: #{tpu_custom_call.1} parent=1 // pred_check_branch
      %141 = sbr.rel (0) target = $region29
    $region28: #{tpu_custom_call.1} parent=1 // pred_region
      _
    $region29: #{tpu_custom_call.1} parent=1 // pred_fallthru
      _
    %142 = vsyncpa [#allocation3], 1
    %143 = vsyncpa [#allocation5], 1

</llo_original>
